<compile_context>
chip_gen: v5e
topology: v5e:2x2
jax: 0.10.0
libtpu: 0.0.40
codegen_flags: <defaults>
</compile_context>

<pallas_src>
import functools

import jax
import jax.numpy as jnp
from jax.experimental import pallas as pl
from jax.experimental.pallas import tpu as pltpu

EPS = 1e-5


def _make_kernel(pre: bool, cin: int, cout: int):
    def kernel(x_ref, w1_ref, w2_ref, wr_ref, pv_ref, o_ref):
        # Single full-block load + one f32 cast: (N, Cin, P), P on lanes.
        x = x_ref[...].astype(jnp.float32)

        def conv1x1(inp, w_ref, n_in):
            # inp:   (N, n_in, P)
            # w_ref: (n_in, Cout, 1)  -- row ci broadcasts as a (1, Cout, 1) vector
            # out:   (N, Cout, P)
            # Contraction over the tiny input-channel axis unrolled as
            # whole-tensor FMAs on fully-occupied vregs (VPU; MXU left idle on
            # purpose at these channel counts).
            acc = inp[:, 0:1, :] * w_ref[0:1, :, :]
            for ci in range(1, n_in):
                acc = acc + inp[:, ci:ci + 1, :] * w_ref[ci:ci + 1, :, :]
            return acc

        def inst_batch_norm(y, gamma, beta):
            # Fused InstanceNorm (per-(n,c) over P, biased var) + training-mode
            # BatchNorm (over (N, P), biased var) + affine, one data pass.
            # y: (N, C, P); gamma/beta: (1, C, 1).
            n = y.shape[0]
            mu = jnp.mean(y, axis=-1, keepdims=True)           # (N, C, 1)
            ms = jnp.mean(y * y, axis=-1, keepdims=True)       # (N, C, 1)
            var = jnp.maximum(ms - mu * mu, 0.0)               # (N, C, 1)
            inv = jax.lax.rsqrt(var + EPS)                     # IN scale
            # IN output has zero mean, so BN variance = mean_n[var/(var+eps)].
            t = var * (inv * inv)                              # (N, C, 1)
            bn_var = t[0:1]                                    # tiny per-sample
            for i in range(1, n):                              # stats: N-1 vreg adds
                bn_var = bn_var + t[i:i + 1]
            bn_var = bn_var * (1.0 / n)                        # (1, C, 1)
            scale = gamma * jax.lax.rsqrt(bn_var + EPS)        # (1, C, 1)
            return (y - mu) * (inv * scale) + beta

        g1, be1 = pv_ref[0:1, :, :], pv_ref[1:2, :, :]
        g2, be2 = pv_ref[2:3, :, :], pv_ref[3:4, :, :]

        # Left branch: conv1 (bias cancels in IN) -> IN -> BN -> ReLU
        h = conv1x1(x, w1_ref, cin)
        h = jnp.maximum(inst_batch_norm(h, g1, be1), 0.0)

        # Left branch: conv2 (bias cancels in IN) -> IN -> BN
        z = conv1x1(h, w2_ref, cout)
        z = inst_batch_norm(z, g2, be2)

        # Right branch / identity skip.
        if pre:
            r = conv1x1(x, wr_ref, cin) + pv_ref[4:5, :, :]
        else:
            r = x

        # out = relu(left + right): one full-block, lane-dense store.
        o_ref[...] = jnp.maximum(z + r, 0.0).astype(o_ref.dtype)

    return kernel


def init_params(key, inchannel, outchannel):
    ks = jax.random.split(key, 10)
    scale1 = 1.0 / jnp.sqrt(inchannel)
    scale2 = 1.0 / jnp.sqrt(outchannel)
    return dict(
        # Conv2d 1x1 weights stored PyTorch-style (Cout, Cin).
        w1=jax.random.uniform(ks[0], (outchannel, inchannel), jnp.float32, -scale1, scale1),
        b1=jax.random.uniform(ks[1], (outchannel,), jnp.float32, -scale1, scale1),
        w2=jax.random.uniform(ks[2], (outchannel, outchannel), jnp.float32, -scale2, scale2),
        b2=jax.random.uniform(ks[3], (outchannel,), jnp.float32, -scale2, scale2),
        wr=jax.random.uniform(ks[4], (outchannel, inchannel), jnp.float32, -scale1, scale1),
        br=jax.random.uniform(ks[5], (outchannel,), jnp.float32, -scale1, scale1),
        # BatchNorm affine params (gamma=1, beta=0 at init).
        g1=jnp.ones((outchannel,), jnp.float32),
        be1=jnp.zeros((outchannel,), jnp.float32),
        g2=jnp.ones((outchannel,), jnp.float32),
        be2=jnp.zeros((outchannel,), jnp.float32),
    )


@functools.partial(jax.jit, static_argnames=("pre",))
def resnet_block_pallas(x_nchw, params, pre):
    N, Cin, H, W = x_nchw.shape
    Cout = params["w1"].shape[0]
    P = H * W
    if not pre and Cin != Cout:
        raise ValueError("identity skip (pre=False) requires inchannel == outchannel")

    # NCHW -> (N, C, P): pure reshape; channels on sublanes, P on lanes.
    x3 = x_nchw.reshape(N, Cin, P)

    # Weights pre-shaped (Cin_like, Cout, 1) so each input-channel row
    # broadcasts in-kernel as a (1, Cout, 1) vector.  (b1/b2 dropped: they
    # cancel exactly under the following InstanceNorm.)
    w1 = jnp.transpose(params["w1"]).astype(jnp.float32)[:, :, None]  # (Cin, Cout, 1)
    w2 = jnp.transpose(params["w2"]).astype(jnp.float32)[:, :, None]  # (Cout, Cout, 1)
    wr = jnp.transpose(params["wr"]).astype(jnp.float32)[:, :, None]  # (Cin, Cout, 1)

    # Per-output-channel vectors packed as (5, Cout, 1) VMEM:
    # rows = [gamma1, beta1, gamma2, beta2, bias_right].
    pvec = jnp.stack(
        [params["g1"], params["be1"], params["g2"], params["be2"], params["br"]],
        axis=0).astype(jnp.float32)[:, :, None]

    vmem = pl.BlockSpec(memory_space=pltpu.MemorySpace.VMEM)

    out = pl.pallas_call(
        _make_kernel(pre, Cin, Cout),
        out_shape=jax.ShapeDtypeStruct((N, Cout, P), x_nchw.dtype),
        in_specs=[vmem, vmem, vmem, vmem, vmem],
        out_specs=vmem,
    )(x3, w1, w2, wr, pvec)

    # (N, Cout, P) -> NCHW: pure reshape.
    return out.reshape(N, Cout, H, W)


def resnet_block_ref(x_nchw, params, pre):
    # Pure-JAX mirror of the PyTorch forward (biases included, explicit BN mean)
    # — intentionally NOT using the kernel's algebraic simplifications.
    N, Cin, H, W = x_nchw.shape
    Cout = params["w1"].shape[0]
    x = x_nchw.reshape(N, Cin, H * W).astype(jnp.float32)

    def conv(a, w, b):
        return jnp.einsum("oc,ncp->nop", w, a) + b[None, :, None]

    def inorm(y):
        mu = jnp.mean(y, axis=2, keepdims=True)
        var = jnp.mean((y - mu) ** 2, axis=2, keepdims=True)
        return (y - mu) * jax.lax.rsqrt(var + EPS)

    def bnorm(y, gamma, beta):
        mu = jnp.mean(y, axis=(0, 2), keepdims=True)
        var = jnp.mean((y - mu) ** 2, axis=(0, 2), keepdims=True)
        return ((y - mu) * jax.lax.rsqrt(var + EPS)
                * gamma[None, :, None] + beta[None, :, None])

    h = conv(x, params["w1"], params["b1"])
    h = jnp.maximum(bnorm(inorm(h), params["g1"], params["be1"]), 0.0)
    z = conv(h, params["w2"], params["b2"])
    z = bnorm(inorm(z), params["g2"], params["be2"])
    r = conv(x, params["wr"], params["br"]) if pre else x
    out = jnp.maximum(z + r, 0.0)
    return out.reshape(N, Cout, H, W).astype(x_nchw.dtype)


if __name__ == "__main__":
    key = jax.random.PRNGKey(0)
    kx, kp1, kp2 = jax.random.split(key, 3)

    # Case 1: pre=True, channel change (inchannel=4 -> outchannel=8).
    x1 = jax.random.normal(kx, (2, 4, 16, 16), jnp.float32)
    p1 = init_params(kp1, 4, 8)
    out1 = resnet_block_pallas(x1, p1, pre=True)
    jax.block_until_ready(out1)
    ref1 = resnet_block_ref(x1, p1, pre=True)
    assert out1.shape == (2, 8, 16, 16)
    err1 = float(jnp.max(jnp.abs(out1 - ref1)))
    assert jnp.allclose(out1, ref1, atol=1e-4, rtol=1e-4), err1

    # Case 2: pre=False, identity skip (inchannel == outchannel == 8).
    x2 = jax.random.normal(kx, (2, 8, 16, 16), jnp.float32)
    p2 = init_params(kp2, 8, 8)
    out2 = resnet_block_pallas(x2, p2, pre=False)
    jax.block_until_ready(out2)
    ref2 = resnet_block_ref(x2, p2, pre=False)
    assert out2.shape == (2, 8, 16, 16)
    err2 = float(jnp.max(jnp.abs(out2 - ref2)))
    assert jnp.allclose(out2, ref2, atol=1e-4, rtol=1e-4), err2

    print("KERNEL_OK")
</pallas_src>

<mosaic_0001>
module attributes {stable_mosaic.version = 11 : i64} {
  func.func @kernel(%arg0: memref<2x4x256xf32, #tpu.memory_space<vmem>>, %arg1: memref<4x8x1xf32, #tpu.memory_space<vmem>>, %arg2: memref<8x8x1xf32, #tpu.memory_space<vmem>>, %arg3: memref<4x8x1xf32, #tpu.memory_space<vmem>>, %arg4: memref<5x8x1xf32, #tpu.memory_space<vmem>>, %arg5: memref<2x8x256xf32, #tpu.memory_space<vmem>>) attributes {dimension_semantics = [], scalar_prefetch = 0 : i64, scratch_operands = 0 : i64, tpu.core_type = #tpu.core_type<tc>} {
    %c0 = arith.constant 0 : index
    %c0_0 = arith.constant 0 : index
    %c0_1 = arith.constant 0 : index
    %0 = vector.load %arg0[%c0, %c0_0, %c0_1] : memref<2x4x256xf32, #tpu.memory_space<vmem>>, vector<2x4x256xf32>
    %c0_2 = arith.constant 0 : index
    %c0_3 = arith.constant 0 : index
    %c0_4 = arith.constant 0 : index
    %1 = vector.load %arg4[%c0_2, %c0_3, %c0_4] : memref<5x8x1xf32, #tpu.memory_space<vmem>>, vector<1x8x1xf32>
    %c1 = arith.constant 1 : index
    %c0_5 = arith.constant 0 : index
    %c0_6 = arith.constant 0 : index
    %2 = vector.load %arg4[%c1, %c0_5, %c0_6] : memref<5x8x1xf32, #tpu.memory_space<vmem>>, vector<1x8x1xf32>
    %c2 = arith.constant 2 : index
    %c0_7 = arith.constant 0 : index
    %c0_8 = arith.constant 0 : index
    %3 = vector.load %arg4[%c2, %c0_7, %c0_8] : memref<5x8x1xf32, #tpu.memory_space<vmem>>, vector<1x8x1xf32>
    %c3 = arith.constant 3 : index
    %c0_9 = arith.constant 0 : index
    %c0_10 = arith.constant 0 : index
    %4 = vector.load %arg4[%c3, %c0_9, %c0_10] : memref<5x8x1xf32, #tpu.memory_space<vmem>>, vector<1x8x1xf32>
    %5 = vector.extract_strided_slice %0 {offsets = [0, 0, 0], sizes = [2, 1, 256], strides = [1, 1, 1]} : vector<2x4x256xf32> to vector<2x1x256xf32>
    %c0_11 = arith.constant 0 : index
    %c0_12 = arith.constant 0 : index
    %c0_13 = arith.constant 0 : index
    %6 = vector.load %arg1[%c0_11, %c0_12, %c0_13] : memref<4x8x1xf32, #tpu.memory_space<vmem>>, vector<1x8x1xf32>
    %7 = vector.broadcast %5 : vector<2x1x256xf32> to vector<2x8x256xf32>
    %8 = vector.broadcast %6 : vector<1x8x1xf32> to vector<2x8x256xf32>
    %9 = arith.mulf %7, %8 : vector<2x8x256xf32>
    %10 = vector.extract_strided_slice %0 {offsets = [0, 1, 0], sizes = [2, 1, 256], strides = [1, 1, 1]} : vector<2x4x256xf32> to vector<2x1x256xf32>
    %c1_14 = arith.constant 1 : index
    %c0_15 = arith.constant 0 : index
    %c0_16 = arith.constant 0 : index
    %11 = vector.load %arg1[%c1_14, %c0_15, %c0_16] : memref<4x8x1xf32, #tpu.memory_space<vmem>>, vector<1x8x1xf32>
    %12 = vector.broadcast %10 : vector<2x1x256xf32> to vector<2x8x256xf32>
    %13 = vector.broadcast %11 : vector<1x8x1xf32> to vector<2x8x256xf32>
    %14 = arith.mulf %12, %13 : vector<2x8x256xf32>
    %15 = arith.addf %9, %14 : vector<2x8x256xf32>
    %16 = vector.extract_strided_slice %0 {offsets = [0, 2, 0], sizes = [2, 1, 256], strides = [1, 1, 1]} : vector<2x4x256xf32> to vector<2x1x256xf32>
    %c2_17 = arith.constant 2 : index
    %c0_18 = arith.constant 0 : index
    %c0_19 = arith.constant 0 : index
    %17 = vector.load %arg1[%c2_17, %c0_18, %c0_19] : memref<4x8x1xf32, #tpu.memory_space<vmem>>, vector<1x8x1xf32>
    %18 = vector.broadcast %16 : vector<2x1x256xf32> to vector<2x8x256xf32>
    %19 = vector.broadcast %17 : vector<1x8x1xf32> to vector<2x8x256xf32>
    %20 = arith.mulf %18, %19 : vector<2x8x256xf32>
    %21 = arith.addf %15, %20 : vector<2x8x256xf32>
    %22 = vector.extract_strided_slice %0 {offsets = [0, 3, 0], sizes = [2, 1, 256], strides = [1, 1, 1]} : vector<2x4x256xf32> to vector<2x1x256xf32>
    %c3_20 = arith.constant 3 : index
    %c0_21 = arith.constant 0 : index
    %c0_22 = arith.constant 0 : index
    %23 = vector.load %arg1[%c3_20, %c0_21, %c0_22] : memref<4x8x1xf32, #tpu.memory_space<vmem>>, vector<1x8x1xf32>
    %24 = vector.broadcast %22 : vector<2x1x256xf32> to vector<2x8x256xf32>
    %25 = vector.broadcast %23 : vector<1x8x1xf32> to vector<2x8x256xf32>
    %26 = arith.mulf %24, %25 : vector<2x8x256xf32>
    %27 = arith.addf %21, %26 : vector<2x8x256xf32>
    %cst = arith.constant dense<0.000000e+00> : vector<2x8xf32>
    %28 = vector.multi_reduction <add>, %27, %cst [2] : vector<2x8x256xf32> to vector<2x8xf32>
    %29 = vector.shape_cast %28 : vector<2x8xf32> to vector<2x8x1xf32>
    %cst_23 = arith.constant 2.560000e+02 : f32
    %30 = vector.broadcast %cst_23 : f32 to vector<2x8x1xf32>
    %31 = arith.divf %29, %30 : vector<2x8x1xf32>
    %32 = arith.mulf %27, %27 : vector<2x8x256xf32>
    %cst_24 = arith.constant dense<0.000000e+00> : vector<2x8xf32>
    %33 = vector.multi_reduction <add>, %32, %cst_24 [2] : vector<2x8x256xf32> to vector<2x8xf32>
    %34 = vector.shape_cast %33 : vector<2x8xf32> to vector<2x8x1xf32>
    %cst_25 = arith.constant 2.560000e+02 : f32
    %35 = vector.broadcast %cst_25 : f32 to vector<2x8x1xf32>
    %36 = arith.divf %34, %35 : vector<2x8x1xf32>
    %37 = arith.mulf %31, %31 : vector<2x8x1xf32>
    %38 = arith.subf %36, %37 : vector<2x8x1xf32>
    %cst_26 = arith.constant 0.000000e+00 : f32
    %39 = vector.broadcast %cst_26 : f32 to vector<2x8x1xf32>
    %40 = arith.maximumf %38, %39 : vector<2x8x1xf32>
    %cst_27 = arith.constant 9.99999974E-6 : f32
    %41 = vector.broadcast %cst_27 : f32 to vector<2x8x1xf32>
    %42 = arith.addf %40, %41 : vector<2x8x1xf32>
    %43 = math.rsqrt %42 : vector<2x8x1xf32>
    %44 = arith.mulf %43, %43 : vector<2x8x1xf32>
    %45 = arith.mulf %40, %44 : vector<2x8x1xf32>
    %46 = vector.extract_strided_slice %45 {offsets = [0, 0, 0], sizes = [1, 8, 1], strides = [1, 1, 1]} : vector<2x8x1xf32> to vector<1x8x1xf32>
    %47 = vector.extract_strided_slice %45 {offsets = [1, 0, 0], sizes = [1, 8, 1], strides = [1, 1, 1]} : vector<2x8x1xf32> to vector<1x8x1xf32>
    %48 = arith.addf %46, %47 : vector<1x8x1xf32>
    %cst_28 = arith.constant 5.000000e-01 : f32
    %49 = vector.broadcast %cst_28 : f32 to vector<1x8x1xf32>
    %50 = arith.mulf %48, %49 : vector<1x8x1xf32>
    %cst_29 = arith.constant 9.99999974E-6 : f32
    %51 = vector.broadcast %cst_29 : f32 to vector<1x8x1xf32>
    %52 = arith.addf %50, %51 : vector<1x8x1xf32>
    %53 = math.rsqrt %52 : vector<1x8x1xf32>
    %54 = arith.mulf %1, %53 : vector<1x8x1xf32>
    %55 = vector.broadcast %31 : vector<2x8x1xf32> to vector<2x8x256xf32>
    %56 = arith.subf %27, %55 : vector<2x8x256xf32>
    %57 = vector.broadcast %54 : vector<1x8x1xf32> to vector<2x8x1xf32>
    %58 = arith.mulf %43, %57 : vector<2x8x1xf32>
    %59 = vector.broadcast %58 : vector<2x8x1xf32> to vector<2x8x256xf32>
    %60 = arith.mulf %56, %59 : vector<2x8x256xf32>
    %61 = vector.broadcast %2 : vector<1x8x1xf32> to vector<2x8x256xf32>
    %62 = arith.addf %60, %61 : vector<2x8x256xf32>
    %cst_30 = arith.constant 0.000000e+00 : f32
    %63 = vector.broadcast %cst_30 : f32 to vector<2x8x256xf32>
    %64 = arith.maximumf %62, %63 : vector<2x8x256xf32>
    %65 = vector.extract_strided_slice %64 {offsets = [0, 0, 0], sizes = [2, 1, 256], strides = [1, 1, 1]} : vector<2x8x256xf32> to vector<2x1x256xf32>
    %c0_31 = arith.constant 0 : index
    %c0_32 = arith.constant 0 : index
    %c0_33 = arith.constant 0 : index
    %66 = vector.load %arg2[%c0_31, %c0_32, %c0_33] : memref<8x8x1xf32, #tpu.memory_space<vmem>>, vector<1x8x1xf32>
    %67 = vector.broadcast %65 : vector<2x1x256xf32> to vector<2x8x256xf32>
    %68 = vector.broadcast %66 : vector<1x8x1xf32> to vector<2x8x256xf32>
    %69 = arith.mulf %67, %68 : vector<2x8x256xf32>
    %70 = vector.extract_strided_slice %64 {offsets = [0, 1, 0], sizes = [2, 1, 256], strides = [1, 1, 1]} : vector<2x8x256xf32> to vector<2x1x256xf32>
    %c1_34 = arith.constant 1 : index
    %c0_35 = arith.constant 0 : index
    %c0_36 = arith.constant 0 : index
    %71 = vector.load %arg2[%c1_34, %c0_35, %c0_36] : memref<8x8x1xf32, #tpu.memory_space<vmem>>, vector<1x8x1xf32>
    %72 = vector.broadcast %70 : vector<2x1x256xf32> to vector<2x8x256xf32>
    %73 = vector.broadcast %71 : vector<1x8x1xf32> to vector<2x8x256xf32>
    %74 = arith.mulf %72, %73 : vector<2x8x256xf32>
    %75 = arith.addf %69, %74 : vector<2x8x256xf32>
    %76 = vector.extract_strided_slice %64 {offsets = [0, 2, 0], sizes = [2, 1, 256], strides = [1, 1, 1]} : vector<2x8x256xf32> to vector<2x1x256xf32>
    %c2_37 = arith.constant 2 : index
    %c0_38 = arith.constant 0 : index
    %c0_39 = arith.constant 0 : index
    %77 = vector.load %arg2[%c2_37, %c0_38, %c0_39] : memref<8x8x1xf32, #tpu.memory_space<vmem>>, vector<1x8x1xf32>
    %78 = vector.broadcast %76 : vector<2x1x256xf32> to vector<2x8x256xf32>
    %79 = vector.broadcast %77 : vector<1x8x1xf32> to vector<2x8x256xf32>
    %80 = arith.mulf %78, %79 : vector<2x8x256xf32>
    %81 = arith.addf %75, %80 : vector<2x8x256xf32>
    %82 = vector.extract_strided_slice %64 {offsets = [0, 3, 0], sizes = [2, 1, 256], strides = [1, 1, 1]} : vector<2x8x256xf32> to vector<2x1x256xf32>
    %c3_40 = arith.constant 3 : index
    %c0_41 = arith.constant 0 : index
    %c0_42 = arith.constant 0 : index
    %83 = vector.load %arg2[%c3_40, %c0_41, %c0_42] : memref<8x8x1xf32, #tpu.memory_space<vmem>>, vector<1x8x1xf32>
    %84 = vector.broadcast %82 : vector<2x1x256xf32> to vector<2x8x256xf32>
    %85 = vector.broadcast %83 : vector<1x8x1xf32> to vector<2x8x256xf32>
    %86 = arith.mulf %84, %85 : vector<2x8x256xf32>
    %87 = arith.addf %81, %86 : vector<2x8x256xf32>
    %88 = vector.extract_strided_slice %64 {offsets = [0, 4, 0], sizes = [2, 1, 256], strides = [1, 1, 1]} : vector<2x8x256xf32> to vector<2x1x256xf32>
    %c4 = arith.constant 4 : index
    %c0_43 = arith.constant 0 : index
    %c0_44 = arith.constant 0 : index
    %89 = vector.load %arg2[%c4, %c0_43, %c0_44] : memref<8x8x1xf32, #tpu.memory_space<vmem>>, vector<1x8x1xf32>
    %90 = vector.broadcast %88 : vector<2x1x256xf32> to vector<2x8x256xf32>
    %91 = vector.broadcast %89 : vector<1x8x1xf32> to vector<2x8x256xf32>
    %92 = arith.mulf %90, %91 : vector<2x8x256xf32>
    %93 = arith.addf %87, %92 : vector<2x8x256xf32>
    %94 = vector.extract_strided_slice %64 {offsets = [0, 5, 0], sizes = [2, 1, 256], strides = [1, 1, 1]} : vector<2x8x256xf32> to vector<2x1x256xf32>
    %c5 = arith.constant 5 : index
    %c0_45 = arith.constant 0 : index
    %c0_46 = arith.constant 0 : index
    %95 = vector.load %arg2[%c5, %c0_45, %c0_46] : memref<8x8x1xf32, #tpu.memory_space<vmem>>, vector<1x8x1xf32>
    %96 = vector.broadcast %94 : vector<2x1x256xf32> to vector<2x8x256xf32>
    %97 = vector.broadcast %95 : vector<1x8x1xf32> to vector<2x8x256xf32>
    %98 = arith.mulf %96, %97 : vector<2x8x256xf32>
    %99 = arith.addf %93, %98 : vector<2x8x256xf32>
    %100 = vector.extract_strided_slice %64 {offsets = [0, 6, 0], sizes = [2, 1, 256], strides = [1, 1, 1]} : vector<2x8x256xf32> to vector<2x1x256xf32>
    %c6 = arith.constant 6 : index
    %c0_47 = arith.constant 0 : index
    %c0_48 = arith.constant 0 : index
    %101 = vector.load %arg2[%c6, %c0_47, %c0_48] : memref<8x8x1xf32, #tpu.memory_space<vmem>>, vector<1x8x1xf32>
    %102 = vector.broadcast %100 : vector<2x1x256xf32> to vector<2x8x256xf32>
    %103 = vector.broadcast %101 : vector<1x8x1xf32> to vector<2x8x256xf32>
    %104 = arith.mulf %102, %103 : vector<2x8x256xf32>
    %105 = arith.addf %99, %104 : vector<2x8x256xf32>
    %106 = vector.extract_strided_slice %64 {offsets = [0, 7, 0], sizes = [2, 1, 256], strides = [1, 1, 1]} : vector<2x8x256xf32> to vector<2x1x256xf32>
    %c7 = arith.constant 7 : index
    %c0_49 = arith.constant 0 : index
    %c0_50 = arith.constant 0 : index
    %107 = vector.load %arg2[%c7, %c0_49, %c0_50] : memref<8x8x1xf32, #tpu.memory_space<vmem>>, vector<1x8x1xf32>
    %108 = vector.broadcast %106 : vector<2x1x256xf32> to vector<2x8x256xf32>
    %109 = vector.broadcast %107 : vector<1x8x1xf32> to vector<2x8x256xf32>
    %110 = arith.mulf %108, %109 : vector<2x8x256xf32>
    %111 = arith.addf %105, %110 : vector<2x8x256xf32>
    %cst_51 = arith.constant dense<0.000000e+00> : vector<2x8xf32>
    %112 = vector.multi_reduction <add>, %111, %cst_51 [2] : vector<2x8x256xf32> to vector<2x8xf32>
    %113 = vector.shape_cast %112 : vector<2x8xf32> to vector<2x8x1xf32>
    %cst_52 = arith.constant 2.560000e+02 : f32
    %114 = vector.broadcast %cst_52 : f32 to vector<2x8x1xf32>
    %115 = arith.divf %113, %114 : vector<2x8x1xf32>
    %116 = arith.mulf %111, %111 : vector<2x8x256xf32>
    %cst_53 = arith.constant dense<0.000000e+00> : vector<2x8xf32>
    %117 = vector.multi_reduction <add>, %116, %cst_53 [2] : vector<2x8x256xf32> to vector<2x8xf32>
    %118 = vector.shape_cast %117 : vector<2x8xf32> to vector<2x8x1xf32>
    %cst_54 = arith.constant 2.560000e+02 : f32
    %119 = vector.broadcast %cst_54 : f32 to vector<2x8x1xf32>
    %120 = arith.divf %118, %119 : vector<2x8x1xf32>
    %121 = arith.mulf %115, %115 : vector<2x8x1xf32>
    %122 = arith.subf %120, %121 : vector<2x8x1xf32>
    %cst_55 = arith.constant 0.000000e+00 : f32
    %123 = vector.broadcast %cst_55 : f32 to vector<2x8x1xf32>
    %124 = arith.maximumf %122, %123 : vector<2x8x1xf32>
    %cst_56 = arith.constant 9.99999974E-6 : f32
    %125 = vector.broadcast %cst_56 : f32 to vector<2x8x1xf32>
    %126 = arith.addf %124, %125 : vector<2x8x1xf32>
    %127 = math.rsqrt %126 : vector<2x8x1xf32>
    %128 = arith.mulf %127, %127 : vector<2x8x1xf32>
    %129 = arith.mulf %124, %128 : vector<2x8x1xf32>
    %130 = vector.extract_strided_slice %129 {offsets = [0, 0, 0], sizes = [1, 8, 1], strides = [1, 1, 1]} : vector<2x8x1xf32> to vector<1x8x1xf32>
    %131 = vector.extract_strided_slice %129 {offsets = [1, 0, 0], sizes = [1, 8, 1], strides = [1, 1, 1]} : vector<2x8x1xf32> to vector<1x8x1xf32>
    %132 = arith.addf %130, %131 : vector<1x8x1xf32>
    %cst_57 = arith.constant 5.000000e-01 : f32
    %133 = vector.broadcast %cst_57 : f32 to vector<1x8x1xf32>
    %134 = arith.mulf %132, %133 : vector<1x8x1xf32>
    %cst_58 = arith.constant 9.99999974E-6 : f32
    %135 = vector.broadcast %cst_58 : f32 to vector<1x8x1xf32>
    %136 = arith.addf %134, %135 : vector<1x8x1xf32>
    %137 = math.rsqrt %136 : vector<1x8x1xf32>
    %138 = arith.mulf %3, %137 : vector<1x8x1xf32>
    %139 = vector.broadcast %115 : vector<2x8x1xf32> to vector<2x8x256xf32>
    %140 = arith.subf %111, %139 : vector<2x8x256xf32>
    %141 = vector.broadcast %138 : vector<1x8x1xf32> to vector<2x8x1xf32>
    %142 = arith.mulf %127, %141 : vector<2x8x1xf32>
    %143 = vector.broadcast %142 : vector<2x8x1xf32> to vector<2x8x256xf32>
    %144 = arith.mulf %140, %143 : vector<2x8x256xf32>
    %145 = vector.broadcast %4 : vector<1x8x1xf32> to vector<2x8x256xf32>
    %146 = arith.addf %144, %145 : vector<2x8x256xf32>
    %147 = vector.extract_strided_slice %0 {offsets = [0, 0, 0], sizes = [2, 1, 256], strides = [1, 1, 1]} : vector<2x4x256xf32> to vector<2x1x256xf32>
    %c0_59 = arith.constant 0 : index
    %c0_60 = arith.constant 0 : index
    %c0_61 = arith.constant 0 : index
    %148 = vector.load %arg3[%c0_59, %c0_60, %c0_61] : memref<4x8x1xf32, #tpu.memory_space<vmem>>, vector<1x8x1xf32>
    %149 = vector.broadcast %147 : vector<2x1x256xf32> to vector<2x8x256xf32>
    %150 = vector.broadcast %148 : vector<1x8x1xf32> to vector<2x8x256xf32>
    %151 = arith.mulf %149, %150 : vector<2x8x256xf32>
    %152 = vector.extract_strided_slice %0 {offsets = [0, 1, 0], sizes = [2, 1, 256], strides = [1, 1, 1]} : vector<2x4x256xf32> to vector<2x1x256xf32>
    %c1_62 = arith.constant 1 : index
    %c0_63 = arith.constant 0 : index
    %c0_64 = arith.constant 0 : index
    %153 = vector.load %arg3[%c1_62, %c0_63, %c0_64] : memref<4x8x1xf32, #tpu.memory_space<vmem>>, vector<1x8x1xf32>
    %154 = vector.broadcast %152 : vector<2x1x256xf32> to vector<2x8x256xf32>
    %155 = vector.broadcast %153 : vector<1x8x1xf32> to vector<2x8x256xf32>
    %156 = arith.mulf %154, %155 : vector<2x8x256xf32>
    %157 = arith.addf %151, %156 : vector<2x8x256xf32>
    %158 = vector.extract_strided_slice %0 {offsets = [0, 2, 0], sizes = [2, 1, 256], strides = [1, 1, 1]} : vector<2x4x256xf32> to vector<2x1x256xf32>
    %c2_65 = arith.constant 2 : index
    %c0_66 = arith.constant 0 : index
    %c0_67 = arith.constant 0 : index
    %159 = vector.load %arg3[%c2_65, %c0_66, %c0_67] : memref<4x8x1xf32, #tpu.memory_space<vmem>>, vector<1x8x1xf32>
    %160 = vector.broadcast %158 : vector<2x1x256xf32> to vector<2x8x256xf32>
    %161 = vector.broadcast %159 : vector<1x8x1xf32> to vector<2x8x256xf32>
    %162 = arith.mulf %160, %161 : vector<2x8x256xf32>
    %163 = arith.addf %157, %162 : vector<2x8x256xf32>
    %164 = vector.extract_strided_slice %0 {offsets = [0, 3, 0], sizes = [2, 1, 256], strides = [1, 1, 1]} : vector<2x4x256xf32> to vector<2x1x256xf32>
    %c3_68 = arith.constant 3 : index
    %c0_69 = arith.constant 0 : index
    %c0_70 = arith.constant 0 : index
    %165 = vector.load %arg3[%c3_68, %c0_69, %c0_70] : memref<4x8x1xf32, #tpu.memory_space<vmem>>, vector<1x8x1xf32>
    %166 = vector.broadcast %164 : vector<2x1x256xf32> to vector<2x8x256xf32>
    %167 = vector.broadcast %165 : vector<1x8x1xf32> to vector<2x8x256xf32>
    %168 = arith.mulf %166, %167 : vector<2x8x256xf32>
    %169 = arith.addf %163, %168 : vector<2x8x256xf32>
    %c4_71 = arith.constant 4 : index
    %c0_72 = arith.constant 0 : index
    %c0_73 = arith.constant 0 : index
    %170 = vector.load %arg4[%c4_71, %c0_72, %c0_73] : memref<5x8x1xf32, #tpu.memory_space<vmem>>, vector<1x8x1xf32>
    %171 = vector.broadcast %170 : vector<1x8x1xf32> to vector<2x8x256xf32>
    %172 = arith.addf %169, %171 : vector<2x8x256xf32>
    %173 = arith.addf %146, %172 : vector<2x8x256xf32>
    %cst_74 = arith.constant 0.000000e+00 : f32
    %174 = vector.broadcast %cst_74 : f32 to vector<2x8x256xf32>
    %175 = arith.maximumf %173, %174 : vector<2x8x256xf32>
    %c0_75 = arith.constant 0 : index
    %c0_76 = arith.constant 0 : index
    %c0_77 = arith.constant 0 : index
    %176 = vector.load %arg5[%c0_75, %c0_76, %c0_77] : memref<2x8x256xf32, #tpu.memory_space<vmem>>, vector<2x8x256xf32>
    tpu.vector_store %arg5[%c0_75, %c0_76, %c0_77], %175 {strides = array<i32>} : memref<2x8x256xf32, #tpu.memory_space<vmem>>, vector<2x8x256xf32>,
    return
  }
}

</mosaic_0001>

<llo_original>
// kernel: resnet_block_pallas.1
$region0: #{resnet_block_pallas.1}
  #allocation0 [shape = 'u32[]', space=smem, size = 0x4, offset = 0x4, fixed_abs, tag = 'smem constant byte address 0x4 - core index']
  #allocation1 [shape = 'u32[72,128]{1,0:T(1,128)}', space=vmem, size = 0x9000, scoped, tag = 'internal scratch']
  %s0 = inlined_call_operand.vmem [shape: f32[2,4,256], index: 0, kind: input, shape index: {}]
  %s1 = inlined_call_operand.vmem [shape: f32[4,8,1], index: 1, kind: input, shape index: {}]
  %s2 = inlined_call_operand.vmem [shape: f32[8,8,1], index: 2, kind: input, shape index: {}]
  %s3 = inlined_call_operand.vmem [shape: f32[4,8,1], index: 3, kind: input, shape index: {}]
  %s4 = inlined_call_operand.vmem [shape: f32[5,8,1], index: 4, kind: input, shape index: {}]
  %s5 = inlined_call_operand.vmem [shape: f32[2,8,256], index: 5, kind: output, shape index: {}]
  %s6 = sld [smem:[#allocation0]]
  $region30: #{resnet_block_pallas.1} parent=0
    _
  %s8 = ssub.s32 1, %s6
  %s9 = scalar_select 0, %s8, %s6
  // Predicated region
  $region2: #{resnet_block_pallas.1} parent=0 // pred_check
    _
  $region3: #{resnet_block_pallas.1} parent=0 // pred_check_branch
    %11 = sbr.rel (0) target = $region5
  $region4: #{resnet_block_pallas.1} parent=0 // pred_region
    _
  $region5: #{resnet_block_pallas.1} parent=0 // pred_fallthru
    _
  // Predicated region
  $region6: #{resnet_block_pallas.1} parent=0 // pred_check
    _
  $region7: #{resnet_block_pallas.1} parent=0 // pred_check_branch
    %13 = sbr.rel (0) target = $region9
  $region8: #{resnet_block_pallas.1} parent=0 // pred_region
    _
  $region9: #{resnet_block_pallas.1} parent=0 // pred_fallthru
    _
  // Predicated region
  $region10: #{resnet_block_pallas.1} parent=0 // pred_check
    _
  $region11: #{resnet_block_pallas.1} parent=0 // pred_check_branch
    %15 = sbr.rel (0) target = $region13
  $region12: #{resnet_block_pallas.1} parent=0 // pred_region
    _
  $region13: #{resnet_block_pallas.1} parent=0 // pred_fallthru
    _
  // Predicated region
  $region14: #{resnet_block_pallas.1} parent=0 // pred_check
    _
  $region15: #{resnet_block_pallas.1} parent=0 // pred_check_branch
    %17 = sbr.rel (0) target = $region17
  $region16: #{resnet_block_pallas.1} parent=0 // pred_region
    _
  $region17: #{resnet_block_pallas.1} parent=0 // pred_fallthru
    _
  // Predicated region
  $region18: #{resnet_block_pallas.1} parent=0 // pred_check
    _
  $region19: #{resnet_block_pallas.1} parent=0 // pred_check_branch
    %19 = sbr.rel (0) target = $region21
  $region20: #{resnet_block_pallas.1} parent=0 // pred_region
    _
  $region21: #{resnet_block_pallas.1} parent=0 // pred_fallthru
    _
  %v20 = vld [vmem:[%s0] sm:$0xff]
  %v21 = vld [vmem:[%s0 + $0x8] sm:$0xff]
  %v22 = vld [vmem:[%s4] sm:$0xff]
  %s23 = scalar_lea.vmem %s4, 8
  %v24 = vld [vmem:[%s23] sm:$0xff]
  %s25 = scalar_lea.vmem %s4, 16
  %v26 = vld [vmem:[%s25] sm:$0xff]
  %s27 = scalar_lea.vmem %s4, 24
  %v28 = vld [vmem:[%s27] sm:$0xff]
  %v29 = vld [vmem:[%s1] sm:$0xff]
  %v32 = vperm.slane %v20, 0
  %v33 = vperm.slane %v20, 4
  %v34 = vperm.slane %v21, 0
  %v35 = vperm.slane %v21, 4
  %v40 = vperm.slane %v32, 0
  %v41 = vperm.slane %v33, 0
  %v42 = vperm.slane %v34, 0
  %v43 = vperm.slane %v35, 0
  %45 = vset.pattern.permute.xlu0 0
  %46 = vperm.xlu0 %45, %v29
  %v47 = vpop.permute.xlu0 %46
  %v49 = vmul.f32 %v40, %v47
  %v50 = vmul.f32 %v41, %v47
  %v51 = vmul.f32 %v42, %v47
  %v52 = vmul.f32 %v43, %v47
  %s53 = scalar_lea.vmem %s1, 8
  %v54 = vld [vmem:[%s53] sm:$0xff]
  %v55 = vperm.slane %v20, 1
  %v56 = vperm.slane %v20, 5
  %v57 = vperm.slane %v21, 1
  %v58 = vperm.slane %v21, 5
  %v63 = vperm.slane %v55, 1
  %v64 = vperm.slane %v56, 1
  %v65 = vperm.slane %v57, 1
  %v66 = vperm.slane %v58, 1
  %68 = vset.pattern.permute.xlu0 0
  %69 = vperm.xlu0 %68, %v54
  %v70 = vpop.permute.xlu0 %69
  %v72 = vmul.f32 %v63, %v70
  %v73 = vmul.f32 %v64, %v70
  %v74 = vmul.f32 %v65, %v70
  %v75 = vmul.f32 %v66, %v70
  %v76 = vadd.f32 %v49, %v72
  %v77 = vadd.f32 %v50, %v73
  %v78 = vadd.f32 %v51, %v74
  %v79 = vadd.f32 %v52, %v75
  %s80 = scalar_lea.vmem %s1, 16
  %v81 = vld [vmem:[%s80] sm:$0xff]
  %v82 = vperm.slane %v20, 2
  %v83 = vperm.slane %v20, 6
  %v84 = vperm.slane %v21, 2
  %v85 = vperm.slane %v21, 6
  %v90 = vperm.slane %v82, 2
  %v91 = vperm.slane %v83, 2
  %v92 = vperm.slane %v84, 2
  %v93 = vperm.slane %v85, 2
  %95 = vset.pattern.permute.xlu0 0
  %96 = vperm.xlu0 %95, %v81
  %v97 = vpop.permute.xlu0 %96
  %v99 = vmul.f32 %v90, %v97
  %v100 = vmul.f32 %v91, %v97
  %v101 = vmul.f32 %v92, %v97
  %v102 = vmul.f32 %v93, %v97
  %v103 = vadd.f32 %v76, %v99
  %v104 = vadd.f32 %v77, %v100
  %v105 = vadd.f32 %v78, %v101
  %v106 = vadd.f32 %v79, %v102
  %s107 = scalar_lea.vmem %s1, 24
  %v108 = vld [vmem:[%s107] sm:$0xff]
  %v109 = vperm.slane %v20, 3
  %v110 = vperm.slane %v20, 7
  %v111 = vperm.slane %v21, 3
  %v112 = vperm.slane %v21, 7
  %v117 = vperm.slane %v109, 3
  %v118 = vperm.slane %v110, 3
  %v119 = vperm.slane %v111, 3
  %v120 = vperm.slane %v112, 3
  %122 = vset.pattern.permute.xlu0 0
  %123 = vperm.xlu0 %122, %v108
  %v124 = vpop.permute.xlu0 %123
  %v126 = vmul.f32 %v117, %v124
  %v127 = vmul.f32 %v118, %v124
  %v128 = vmul.f32 %v119, %v124
  %v129 = vmul.f32 %v120, %v124
  %v130 = vadd.f32 %v103, %v126
  %v131 = vadd.f32 %v104, %v127
  %v132 = vadd.f32 %v105, %v128
  %v133 = vadd.f32 %v106, %v129
  %v134 = vadd.f32 %v130, %v131
  %135 = vadd.xlane.f32.xlu0 %v134
  %v136 = vpop.xlane.xlu0 %135
  %v137 = vadd.f32 %v132, %v133
  %138 = vadd.xlane.f32.xlu0 %v137
  %v139 = vpop.xlane.xlu0 %138
  %v140 = vrcp.pop 256.0
  %v141 = vmul.f32 256.0, %v140
  %v142 = vsub.f32 1.0, %v141
  %v143 = vmul.f32 %v140, %v142
  %v144 = vadd.f32 %v140, %v143
  %vm145 = vweird.f32 %v140
  %v146 = vsel %vm145, %v140, %v144
  %v147 = vmul.f32 %v136, %v146
  %v148 = vmul.f32 %v139, %v146
  %v149 = vmul.f32 %v130, %v130
  %v150 = vmul.f32 %v131, %v131
  %v151 = vmul.f32 %v132, %v132
  %v152 = vmul.f32 %v133, %v133
  %v153 = vadd.f32 %v149, %v150
  %154 = vadd.xlane.f32.xlu0 %v153
  %v155 = vpop.xlane.xlu0 %154
  %v156 = vadd.f32 %v151, %v152
  %157 = vadd.xlane.f32.xlu0 %v156
  %v158 = vpop.xlane.xlu0 %157
  %v159 = vmul.f32 %v155, %v146
  %v160 = vmul.f32 %v158, %v146
  %v161 = vmul.f32 %v147, %v147
  %v162 = vmul.f32 %v148, %v148
  %v163 = vsub.f32 %v159, %v161
  %v164 = vsub.f32 %v160, %v162
  %v165 = vmax.f32 %v163, 0.0
  %v166 = vmax.f32 %v164, 0.0
  %v167 = vadd.f32 %v165, 1e-05
  %v168 = vadd.f32 %v166, 1e-05
  %v169 = vrsqrt.pop %v167
  %v170 = vmul.f32 %v169, %v167
  %v171 = vmul.f32 %v170, %v169
  %v172 = vmul.f32 0.5, %v171
  %v173 = vsub.f32 1.5, %v172
  %v174 = vmul.f32 %v169, %v173
  %vm175 = vweird.f32 %v167
  %vm176 = vweird.f32 %v169
  %vm177 = vmor %vm175, %vm176
  %v178 = vsel %vm177, %v169, %v174
  %v179 = vrsqrt.pop %v168
  %v180 = vmul.f32 %v179, %v168
  %v181 = vmul.f32 %v180, %v179
  %v182 = vmul.f32 0.5, %v181
  %v183 = vsub.f32 1.5, %v182
  %v184 = vmul.f32 %v179, %v183
  %vm185 = vweird.f32 %v168
  %vm186 = vweird.f32 %v179
  %vm187 = vmor %vm185, %vm186
  %v188 = vsel %vm187, %v179, %v184
  %v189 = vmul.f32 %v178, %v178
  %v190 = vmul.f32 %v188, %v188
  %v191 = vmul.f32 %v165, %v189
  %v192 = vmul.f32 %v166, %v190
  %v193 = vadd.f32 %v191, %v192
  %v194 = vmul.f32 %v193, 0.5
  %v195 = vadd.f32 %v194, 1e-05
  %v196 = vrsqrt.pop %v195
  %v197 = vmul.f32 %v196, %v195
  %v198 = vmul.f32 %v197, %v196
  %v199 = vmul.f32 0.5, %v198
  %v200 = vsub.f32 1.5, %v199
  %v201 = vmul.f32 %v196, %v200
  %vm202 = vweird.f32 %v195
  %vm203 = vweird.f32 %v196
  %vm204 = vmor %vm202, %vm203
  %v205 = vsel %vm204, %v196, %v201
  %v206 = vmul.f32 %v22, %v205
  %v207 = vsub.f32 %v130, %v147
  %v208 = vsub.f32 %v131, %v147
  %v209 = vsub.f32 %v132, %v148
  %v210 = vsub.f32 %v133, %v148
  %v211 = vmul.f32 %v178, %v206
  %v212 = vmul.f32 %v188, %v206
  %214 = vset.pattern.permute.xlu0 0
  %215 = vperm.xlu0 %214, %v211
  %v216 = vpop.permute.xlu0 %215
  %219 = vset.pattern.permute.xlu0 0
  %220 = vperm.xlu0 %219, %v212
  %v221 = vpop.permute.xlu0 %220
  %v223 = vmul.f32 %v207, %v216
  %v224 = vmul.f32 %v208, %v216
  %v225 = vmul.f32 %v209, %v221
  %v226 = vmul.f32 %v210, %v221
  %228 = vset.pattern.permute.xlu0 0
  %229 = vperm.xlu0 %228, %v24
  %v230 = vpop.permute.xlu0 %229
  %v232 = vadd.f32 %v223, %v230
  %v233 = vadd.f32 %v224, %v230
  %v234 = vadd.f32 %v225, %v230
  %v235 = vadd.f32 %v226, %v230
  %v236 = vmax.f32 %v232, 0.0
  %v237 = vmax.f32 %v233, 0.0
  %v238 = vmax.f32 %v234, 0.0
  %v239 = vmax.f32 %v235, 0.0
  %v240 = vld [vmem:[%s2] sm:$0xff]
  %v241 = vperm.slane %v236, 0
  %v242 = vperm.slane %v237, 0
  %v243 = vperm.slane %v238, 0
  %v244 = vperm.slane %v239, 0
  %246 = vset.pattern.permute.xlu0 0
  %247 = vperm.xlu0 %246, %v240
  %v248 = vpop.permute.xlu0 %247
  %v250 = vmul.f32 %v241, %v248
  %v251 = vmul.f32 %v242, %v248
  %v252 = vmul.f32 %v243, %v248
  %v253 = vmul.f32 %v244, %v248
  %s254 = scalar_lea.vmem %s2, 8
  %v255 = vld [vmem:[%s254] sm:$0xff]
  %v256 = vperm.slane %v236, 1
  %v257 = vperm.slane %v237, 1
  %v258 = vperm.slane %v238, 1
  %v259 = vperm.slane %v239, 1
  %261 = vset.pattern.permute.xlu0 0
  %262 = vperm.xlu0 %261, %v255
  %v263 = vpop.permute.xlu0 %262
  %v265 = vmul.f32 %v256, %v263
  %v266 = vmul.f32 %v257, %v263
  %v267 = vmul.f32 %v258, %v263
  %v268 = vmul.f32 %v259, %v263
  %v269 = vadd.f32 %v250, %v265
  %v270 = vadd.f32 %v251, %v266
  %v271 = vadd.f32 %v252, %v267
  %v272 = vadd.f32 %v253, %v268
  %s273 = scalar_lea.vmem %s2, 16
  %v274 = vld [vmem:[%s273] sm:$0xff]
  %v275 = vperm.slane %v236, 2
  %v276 = vperm.slane %v237, 2
  %v277 = vperm.slane %v238, 2
  %v278 = vperm.slane %v239, 2
  %280 = vset.pattern.permute.xlu0 0
  %281 = vperm.xlu0 %280, %v274
  %v282 = vpop.permute.xlu0 %281
  %v284 = vmul.f32 %v275, %v282
  %v285 = vmul.f32 %v276, %v282
  %v286 = vmul.f32 %v277, %v282
  %v287 = vmul.f32 %v278, %v282
  %v288 = vadd.f32 %v269, %v284
  %v289 = vadd.f32 %v270, %v285
  %v290 = vadd.f32 %v271, %v286
  %v291 = vadd.f32 %v272, %v287
  %s292 = scalar_lea.vmem %s2, 24
  %v293 = vld [vmem:[%s292] sm:$0xff]
  %v294 = vperm.slane %v236, 3
  %v295 = vperm.slane %v237, 3
  %v296 = vperm.slane %v238, 3
  %v297 = vperm.slane %v239, 3
  %299 = vset.pattern.permute.xlu0 0
  %300 = vperm.xlu0 %299, %v293
  %v301 = vpop.permute.xlu0 %300
  %v303 = vmul.f32 %v294, %v301
  %v304 = vmul.f32 %v295, %v301
  %v305 = vmul.f32 %v296, %v301
  %v306 = vmul.f32 %v297, %v301
  %v307 = vadd.f32 %v288, %v303
  %v308 = vadd.f32 %v289, %v304
  %v309 = vadd.f32 %v290, %v305
  %v310 = vadd.f32 %v291, %v306
  %s311 = scalar_lea.vmem %s2, 32
  %v312 = vld [vmem:[%s311] sm:$0xff]
  %v313 = vperm.slane %v236, 4
  %v314 = vperm.slane %v237, 4
  %v315 = vperm.slane %v238, 4
  %v316 = vperm.slane %v239, 4
  %318 = vset.pattern.permute.xlu0 0
  %319 = vperm.xlu0 %318, %v312
  %v320 = vpop.permute.xlu0 %319
  %v322 = vmul.f32 %v313, %v320
  %v323 = vmul.f32 %v314, %v320
  %v324 = vmul.f32 %v315, %v320
  %v325 = vmul.f32 %v316, %v320
  %v326 = vadd.f32 %v307, %v322
  %v327 = vadd.f32 %v308, %v323
  %v328 = vadd.f32 %v309, %v324
  %v329 = vadd.f32 %v310, %v325
  %s330 = scalar_lea.vmem %s2, 40
  %v331 = vld [vmem:[%s330] sm:$0xff]
  %v332 = vperm.slane %v236, 5
  %v333 = vperm.slane %v237, 5
  %v334 = vperm.slane %v238, 5
  %v335 = vperm.slane %v239, 5
  %337 = vset.pattern.permute.xlu0 0
  %338 = vperm.xlu0 %337, %v331
  %v339 = vpop.permute.xlu0 %338
  %v341 = vmul.f32 %v332, %v339
  %v342 = vmul.f32 %v333, %v339
  %v343 = vmul.f32 %v334, %v339
  %v344 = vmul.f32 %v335, %v339
  %v345 = vadd.f32 %v326, %v341
  %v346 = vadd.f32 %v327, %v342
  %v347 = vadd.f32 %v328, %v343
  %v348 = vadd.f32 %v329, %v344
  %s349 = scalar_lea.vmem %s2, 48
  %v350 = vld [vmem:[%s349] sm:$0xff]
  %v351 = vperm.slane %v236, 6
  %v352 = vperm.slane %v237, 6
  %v353 = vperm.slane %v238, 6
  %v354 = vperm.slane %v239, 6
  %356 = vset.pattern.permute.xlu0 0
  %357 = vperm.xlu0 %356, %v350
  %v358 = vpop.permute.xlu0 %357
  %v360 = vmul.f32 %v351, %v358
  %v361 = vmul.f32 %v352, %v358
  %v362 = vmul.f32 %v353, %v358
  %v363 = vmul.f32 %v354, %v358
  %v364 = vadd.f32 %v345, %v360
  %v365 = vadd.f32 %v346, %v361
  %v366 = vadd.f32 %v347, %v362
  %v367 = vadd.f32 %v348, %v363
  %s368 = scalar_lea.vmem %s2, 56
  %v369 = vld [vmem:[%s368] sm:$0xff]
  %v370 = vperm.slane %v236, 7
  %v371 = vperm.slane %v237, 7
  %v372 = vperm.slane %v238, 7
  %v373 = vperm.slane %v239, 7
  %375 = vset.pattern.permute.xlu0 0
  %376 = vperm.xlu0 %375, %v369
  %v377 = vpop.permute.xlu0 %376
  %v379 = vmul.f32 %v370, %v377
  %v380 = vmul.f32 %v371, %v377
  %v381 = vmul.f32 %v372, %v377
  %v382 = vmul.f32 %v373, %v377
  %v383 = vadd.f32 %v364, %v379
  %v384 = vadd.f32 %v365, %v380
  %v385 = vadd.f32 %v366, %v381
  %v386 = vadd.f32 %v367, %v382
  %v387 = vadd.f32 %v383, %v384
  %388 = vadd.xlane.f32.xlu0 %v387
  %v389 = vpop.xlane.xlu0 %388
  %v390 = vadd.f32 %v385, %v386
  %391 = vadd.xlane.f32.xlu0 %v390
  %v392 = vpop.xlane.xlu0 %391
  %v393 = vmul.f32 %v389, %v146
  %v394 = vmul.f32 %v392, %v146
  %v395 = vmul.f32 %v383, %v383
  %v396 = vmul.f32 %v384, %v384
  %v397 = vmul.f32 %v385, %v385
  %v398 = vmul.f32 %v386, %v386
  %v399 = vadd.f32 %v395, %v396
  %400 = vadd.xlane.f32.xlu0 %v399
  %v401 = vpop.xlane.xlu0 %400
  %v402 = vadd.f32 %v397, %v398
  %403 = vadd.xlane.f32.xlu0 %v402
  %v404 = vpop.xlane.xlu0 %403
  %v405 = vmul.f32 %v401, %v146
  %v406 = vmul.f32 %v404, %v146
  %v407 = vmul.f32 %v393, %v393
  %v408 = vmul.f32 %v394, %v394
  %v409 = vsub.f32 %v405, %v407
  %v410 = vsub.f32 %v406, %v408
  %v411 = vmax.f32 %v409, 0.0
  %v412 = vmax.f32 %v410, 0.0
  %v413 = vadd.f32 %v411, 1e-05
  %v414 = vadd.f32 %v412, 1e-05
  %v415 = vrsqrt.pop %v413
  %v416 = vmul.f32 %v415, %v413
  %v417 = vmul.f32 %v416, %v415
  %v418 = vmul.f32 0.5, %v417
  %v419 = vsub.f32 1.5, %v418
  %v420 = vmul.f32 %v415, %v419
  %vm421 = vweird.f32 %v413
  %vm422 = vweird.f32 %v415
  %vm423 = vmor %vm421, %vm422
  %v424 = vsel %vm423, %v415, %v420
  %v425 = vrsqrt.pop %v414
  %v426 = vmul.f32 %v425, %v414
  %v427 = vmul.f32 %v426, %v425
  %v428 = vmul.f32 0.5, %v427
  %v429 = vsub.f32 1.5, %v428
  %v430 = vmul.f32 %v425, %v429
  %vm431 = vweird.f32 %v414
  %vm432 = vweird.f32 %v425
  %vm433 = vmor %vm431, %vm432
  %v434 = vsel %vm433, %v425, %v430
  %v435 = vmul.f32 %v424, %v424
  %v436 = vmul.f32 %v434, %v434
  %v437 = vmul.f32 %v411, %v435
  %v438 = vmul.f32 %v412, %v436
  %v439 = vadd.f32 %v437, %v438
  %v440 = vmul.f32 %v439, 0.5
  %v441 = vadd.f32 %v440, 1e-05
  %v442 = vrsqrt.pop %v441
  %v443 = vmul.f32 %v442, %v441
  %v444 = vmul.f32 %v443, %v442
  %v445 = vmul.f32 0.5, %v444
  %v446 = vsub.f32 1.5, %v445
  %v447 = vmul.f32 %v442, %v446
  %vm448 = vweird.f32 %v441
  %vm449 = vweird.f32 %v442
  %vm450 = vmor %vm448, %vm449
  %v451 = vsel %vm450, %v442, %v447
  %v452 = vmul.f32 %v26, %v451
  %v453 = vsub.f32 %v383, %v393
  %v454 = vsub.f32 %v384, %v393
  %v455 = vsub.f32 %v385, %v394
  %v456 = vsub.f32 %v386, %v394
  %v457 = vmul.f32 %v424, %v452
  %v458 = vmul.f32 %v434, %v452
  %460 = vset.pattern.permute.xlu0 0
  %461 = vperm.xlu0 %460, %v457
  %v462 = vpop.permute.xlu0 %461
  %465 = vset.pattern.permute.xlu0 0
  %466 = vperm.xlu0 %465, %v458
  %v467 = vpop.permute.xlu0 %466
  %v469 = vmul.f32 %v453, %v462
  %v470 = vmul.f32 %v454, %v462
  %v471 = vmul.f32 %v455, %v467
  %v472 = vmul.f32 %v456, %v467
  %474 = vset.pattern.permute.xlu0 0
  %475 = vperm.xlu0 %474, %v28
  %v476 = vpop.permute.xlu0 %475
  %v478 = vadd.f32 %v469, %v476
  %v479 = vadd.f32 %v470, %v476
  %v480 = vadd.f32 %v471, %v476
  %v481 = vadd.f32 %v472, %v476
  %v482 = vld [vmem:[%s3] sm:$0xff]
  %484 = vset.pattern.permute.xlu0 0
  %485 = vperm.xlu0 %484, %v482
  %v486 = vpop.permute.xlu0 %485
  %v488 = vmul.f32 %v40, %v486
  %v489 = vmul.f32 %v41, %v486
  %v490 = vmul.f32 %v42, %v486
  %v491 = vmul.f32 %v43, %v486
  %s492 = scalar_lea.vmem %s3, 8
  %v493 = vld [vmem:[%s492] sm:$0xff]
  %495 = vset.pattern.permute.xlu0 0
  %496 = vperm.xlu0 %495, %v493
  %v497 = vpop.permute.xlu0 %496
  %v499 = vmul.f32 %v63, %v497
  %v500 = vmul.f32 %v64, %v497
  %v501 = vmul.f32 %v65, %v497
  %v502 = vmul.f32 %v66, %v497
  %v503 = vadd.f32 %v488, %v499
  %v504 = vadd.f32 %v489, %v500
  %v505 = vadd.f32 %v490, %v501
  %v506 = vadd.f32 %v491, %v502
  %s507 = scalar_lea.vmem %s3, 16
  %v508 = vld [vmem:[%s507] sm:$0xff]
  %510 = vset.pattern.permute.xlu0 0
  %511 = vperm.xlu0 %510, %v508
  %v512 = vpop.permute.xlu0 %511
  %v514 = vmul.f32 %v90, %v512
  %v515 = vmul.f32 %v91, %v512
  %v516 = vmul.f32 %v92, %v512
  %v517 = vmul.f32 %v93, %v512
  %v518 = vadd.f32 %v503, %v514
  %v519 = vadd.f32 %v504, %v515
  %v520 = vadd.f32 %v505, %v516
  %v521 = vadd.f32 %v506, %v517
  %s522 = scalar_lea.vmem %s3, 24
  %v523 = vld [vmem:[%s522] sm:$0xff]
  %525 = vset.pattern.permute.xlu0 0
  %526 = vperm.xlu0 %525, %v523
  %v527 = vpop.permute.xlu0 %526
  %v529 = vmul.f32 %v117, %v527
  %v530 = vmul.f32 %v118, %v527
  %v531 = vmul.f32 %v119, %v527
  %v532 = vmul.f32 %v120, %v527
  %v533 = vadd.f32 %v518, %v529
  %v534 = vadd.f32 %v519, %v530
  %v535 = vadd.f32 %v520, %v531
  %v536 = vadd.f32 %v521, %v532
  %s537 = scalar_lea.vmem %s4, 32
  %v538 = vld [vmem:[%s537] sm:$0xff]
  %540 = vset.pattern.permute.xlu0 0
  %541 = vperm.xlu0 %540, %v538
  %v542 = vpop.permute.xlu0 %541
  %v544 = vadd.f32 %v533, %v542
  %v545 = vadd.f32 %v534, %v542
  %v546 = vadd.f32 %v535, %v542
  %v547 = vadd.f32 %v536, %v542
  %v548 = vadd.f32 %v478, %v544
  %v549 = vadd.f32 %v479, %v545
  %v550 = vadd.f32 %v480, %v546
  %v551 = vadd.f32 %v481, %v547
  %v552 = vmax.f32 %v548, 0.0
  %v553 = vmax.f32 %v549, 0.0
  %v554 = vmax.f32 %v550, 0.0
  %v555 = vmax.f32 %v551, 0.0
  %556 = vst [vmem:[%s5] sm:$0xff] %v552
  %557 = vst [vmem:[%s5 + $0x8] sm:$0xff] %v553
  %558 = vst [vmem:[%s5 + $0x10] sm:$0xff] %v554
  %559 = vst [vmem:[%s5 + $0x18] sm:$0xff] %v555
  // Predicated region
  $region22: #{resnet_block_pallas.1} parent=0 // pred_check
    _
  $region23: #{resnet_block_pallas.1} parent=0 // pred_check_branch
    %561 = sbr.rel (0) target = $region25
  $region24: #{resnet_block_pallas.1} parent=0 // pred_region
    _
  $region25: #{resnet_block_pallas.1} parent=0 // pred_fallthru
    _
  // Predicated region
  $region26: #{resnet_block_pallas.1} parent=0 // pred_check
    _
  $region27: #{resnet_block_pallas.1} parent=0 // pred_check_branch
    %563 = sbr.rel (0) target = $region29
  $region28: #{resnet_block_pallas.1} parent=0 // pred_region
    _
  $region29: #{resnet_block_pallas.1} parent=0 // pred_fallthru
    _

</llo_original>
